<compile_context>
chip_gen: v6e
topology: v6e:2x2x1
jax: 0.10.0
libtpu: 0.0.40
codegen_flags: <defaults>
</compile_context>

<pallas_src>
import functools

import jax
import jax.numpy as jnp
from jax import lax
from jax.experimental import pallas as pl
from jax.experimental.pallas import tpu as pltpu


def _round_up(x, m):
    return ((x + m - 1) // m) * m


def mlp_kernel(x_ref, w1_ref, b1_ref, w2_ref, b2_ref, w3_ref, b3_ref, o_ref, *, chunk):
    # x_ref: [TILE_B, 8] natural batch-major layout (no wrapper transpose).
    # w*_ref: [in, out] (transposed once, outside, from PyTorch [out, in]).
    # b*_ref: [1, out] row vectors (broadcast over rows).
    w1 = w1_ref[...]
    w2 = w2_ref[...]
    w3 = w3_ref[...]
    b1 = b1_ref[...]
    b2 = b2_ref[...]
    b3 = b3_ref[...]
    n_chunks = x_ref.shape[0] // chunk

    def body(c, carry):
        r = pl.multiple_of(c * chunk, chunk)
        xc = x_ref[pl.ds(r, chunk), :]                                   # [chunk, 8]
        h = jnp.dot(xc, w1, preferred_element_type=jnp.float32) + b1     # [chunk, 32]
        h = jnp.maximum(h, 0.0)
        h = jnp.dot(h, w2, preferred_element_type=jnp.float32) + b2      # [chunk, 32]
        h = jnp.maximum(h, 0.0)
        h = jnp.dot(h, w3, preferred_element_type=jnp.float32) + b3      # [chunk, 4]
        o_ref[pl.ds(r, chunk), :] = h.astype(o_ref.dtype)
        return carry

    lax.fori_loop(0, n_chunks, body, 0)


def neural_net_forward(x, params, *, tile_b=16384):
    """x: [B, 8] float32 -> [B, 4] float32 (same semantics as NeuralNet.forward).

    params (PyTorch-native layout): w1 [32,8], b1 [32], w2 [32,32], b2 [32],
    w3 [4,32], b3 [4].
    """
    x = jnp.asarray(x, jnp.float32)
    B = x.shape[0]

    # Tile selection: multiple of 128 (lane constraint), adaptive to B, and
    # capped so (2x x-tile + 2x out-tile, lane-padded 8->128 / 4->128 in VMEM)
    # stays within a v7x-safe budget (~40 MiB).  v5e/v6e have more headroom.
    tile_b = _round_up(max(int(tile_b), 128), 128)
    tile_b = min(tile_b, _round_up(max(B, 1), 128))
    tile_b = min(tile_b, 16384)

    Bp = _round_up(B, tile_b)
    if Bp != B:
        x = jnp.pad(x, ((0, Bp - B), (0, 0)))   # zero-padded tail rows, sliced off below

    # In-kernel compute chunk (rows per inner fori_loop step); must divide tile_b.
    chunk = 512
    while tile_b % chunk:
        chunk //= 2

    # VMEM budget: x block (tile_b, 8) and out block (tile_b, 4) both lane-pad
    # to 128 lanes in VMEM (4 B/elem), double-buffered; + headroom for weights,
    # chunk intermediates and compiler scratch.
    vmem_limit = 2 * (2 * tile_b * 128 * 4) + (4 << 20)
    vmem_limit = max(vmem_limit, 16 << 20)

    # Weights re-laid out once (tiny tensors): [out, in] -> [in, out]; biases -> [1, out].
    w1t = params["w1"].T.astype(jnp.float32)          # [8, 32]
    w2t = params["w2"].T.astype(jnp.float32)          # [32, 32]
    w3t = params["w3"].T.astype(jnp.float32)          # [32, 4]
    b1 = params["b1"].reshape(1, -1).astype(jnp.float32)
    b2 = params["b2"].reshape(1, -1).astype(jnp.float32)
    b3 = params["b3"].reshape(1, -1).astype(jnp.float32)

    const = lambda i: (0, 0)                          # weights/biases stay VMEM-resident
    out = pl.pallas_call(
        functools.partial(mlp_kernel, chunk=chunk),
        out_shape=jax.ShapeDtypeStruct((Bp, 4), jnp.float32),
        grid_spec=pltpu.PrefetchScalarGridSpec(
            num_scalar_prefetch=0,
            grid=(Bp // tile_b,),
            in_specs=[
                pl.BlockSpec((tile_b, 8), lambda i: (i, 0)),   # x streamed over batch rows
                pl.BlockSpec((8, 32), const),
                pl.BlockSpec((1, 32), const),
                pl.BlockSpec((32, 32), const),
                pl.BlockSpec((1, 32), const),
                pl.BlockSpec((32, 4), const),
                pl.BlockSpec((1, 4), const),
            ],
            out_specs=pl.BlockSpec((tile_b, 4), lambda i: (i, 0)),
        ),
        compiler_params=pltpu.CompilerParams(
            # On v7x, consider pltpu.CORE_PARALLEL here if one TC sits idle.
            dimension_semantics=("parallel",),
            vmem_limit_bytes=int(vmem_limit),
        ),
    )(x, w1t, b1, w2t, b2, w3t, b3)

    return out[:B]


def init_params(key):
    """Mimics nn.Linear's uniform(-1/sqrt(fan_in), 1/sqrt(fan_in)); PyTorch [out, in] layout."""
    dims = [(8, 32), (32, 32), (32, 4)]
    params = {}
    for i, (fan_in, fan_out) in enumerate(dims, start=1):
        key, kw, kb = jax.random.split(key, 3)
        bound = 1.0 / jnp.sqrt(float(fan_in))
        params[f"w{i}"] = jax.random.uniform(
            kw, (fan_out, fan_in), jnp.float32, minval=-bound, maxval=bound)
        params[f"b{i}"] = jax.random.uniform(
            kb, (fan_out,), jnp.float32, minval=-bound, maxval=bound)
    return params


def _reference(x, params):
    h = jnp.maximum(x @ params["w1"].T + params["b1"], 0.0)
    h = jnp.maximum(h @ params["w2"].T + params["b2"], 0.0)
    return h @ params["w3"].T + params["b3"]


if __name__ == "__main__":
    key = jax.random.PRNGKey(0)
    key, kx1, kx2 = jax.random.split(key, 3)
    params = init_params(key)

    # Case 1: small batch (single 128-row tile after padding).
    B1 = 8
    x1 = jax.random.normal(kx1, (B1, 8), jnp.float32)
    out1 = jax.block_until_ready(neural_net_forward(x1, params))
    ref1 = _reference(x1, params)
    assert out1.shape == (B1, 4)
    assert jnp.allclose(out1, ref1, atol=1e-5, rtol=1e-5)

    # Case 2: multi-tile grid with a ragged tail (padding + pipelining + chunk loop).
    B2 = 300
    x2 = jax.random.normal(kx2, (B2, 8), jnp.float32)
    out2 = jax.block_until_ready(neural_net_forward(x2, params, tile_b=128))
    ref2 = _reference(x2, params)
    assert out2.shape == (B2, 4)
    assert jnp.allclose(out2, ref2, atol=1e-5, rtol=1e-5)

    print("KERNEL_OK")
</pallas_src>

<mosaic_0001>
module attributes {stable_mosaic.version = 11 : i64} {
  func.func @mlp_kernel(%arg0: i32, %arg1: memref<128x8xf32, #tpu.memory_space<vmem>>, %arg2: memref<8x32xf32, #tpu.memory_space<vmem>>, %arg3: memref<1x32xf32, #tpu.memory_space<vmem>>, %arg4: memref<32x32xf32, #tpu.memory_space<vmem>>, %arg5: memref<1x32xf32, #tpu.memory_space<vmem>>, %arg6: memref<32x4xf32, #tpu.memory_space<vmem>>, %arg7: memref<1x4xf32, #tpu.memory_space<vmem>>, %arg8: memref<128x4xf32, #tpu.memory_space<vmem>>) attributes {dimension_semantics = [#tpu.dimension_semantics<parallel>], iteration_bounds = array<i64: 1>, scalar_prefetch = 0 : i64, scratch_operands = 0 : i64, tpu.core_type = #tpu.core_type<tc>, window_params = [{transform_indices = @transform_0, window_bounds = array<i64: 128, 8>}, {pipeline_mode = #tpu.pipeline_mode<synchronous>, transform_indices = @transform_1, window_bounds = array<i64: 8, 32>}, {pipeline_mode = #tpu.pipeline_mode<synchronous>, transform_indices = @transform_2, window_bounds = array<i64: 1, 32>}, {pipeline_mode = #tpu.pipeline_mode<synchronous>, transform_indices = @transform_3, window_bounds = array<i64: 32, 32>}, {pipeline_mode = #tpu.pipeline_mode<synchronous>, transform_indices = @transform_4, window_bounds = array<i64: 1, 32>}, {pipeline_mode = #tpu.pipeline_mode<synchronous>, transform_indices = @transform_5, window_bounds = array<i64: 32, 4>}, {pipeline_mode = #tpu.pipeline_mode<synchronous>, transform_indices = @transform_6, window_bounds = array<i64: 1, 4>}, {transform_indices = @transform_7, window_bounds = array<i64: 128, 4>}]} {
    %c0 = arith.constant 0 : index
    %c0_0 = arith.constant 0 : index
    %0 = vector.load %arg2[%c0, %c0_0] : memref<8x32xf32, #tpu.memory_space<vmem>>, vector<8x32xf32>
    %c0_1 = arith.constant 0 : index
    %c0_2 = arith.constant 0 : index
    %1 = vector.load %arg4[%c0_1, %c0_2] : memref<32x32xf32, #tpu.memory_space<vmem>>, vector<32x32xf32>
    %c0_3 = arith.constant 0 : index
    %c0_4 = arith.constant 0 : index
    %2 = vector.load %arg6[%c0_3, %c0_4] : memref<32x4xf32, #tpu.memory_space<vmem>>, vector<32x4xf32>
    %c0_5 = arith.constant 0 : index
    %c0_6 = arith.constant 0 : index
    %3 = vector.load %arg3[%c0_5, %c0_6] : memref<1x32xf32, #tpu.memory_space<vmem>>, vector<1x32xf32>
    %c0_7 = arith.constant 0 : index
    %c0_8 = arith.constant 0 : index
    %4 = vector.load %arg5[%c0_7, %c0_8] : memref<1x32xf32, #tpu.memory_space<vmem>>, vector<1x32xf32>
    %c0_9 = arith.constant 0 : index
    %c0_10 = arith.constant 0 : index
    %5 = vector.load %arg7[%c0_9, %c0_10] : memref<1x4xf32, #tpu.memory_space<vmem>>, vector<1x4xf32>
    %c0_i32 = arith.constant 0 : i32
    %c128_i32 = arith.constant 128 : i32
    %6 = arith.muli %c0_i32, %c128_i32 : i32
    %7 = tpu.assume_multiple %6, 128 : i32
    %8 = arith.index_cast %7 : i32 to index
    %c0_11 = arith.constant 0 : index
    %9 = vector.load %arg1[%8, %c0_11] : memref<128x8xf32, #tpu.memory_space<vmem>>, vector<128x8xf32>
    %cst = arith.constant dense<0.000000e+00> : vector<128x32xf32>
    %10 = tpu.matmul %9, %0, %cst {dimension_numbers = #tpu.dot_dimension_numbers<[1], [0], [0], [1], [0, 0, 1, 1], [], []>} : vector<128x8xf32>, vector<8x32xf32>, vector<128x32xf32> -> vector<128x32xf32>
    %11 = vector.broadcast %3 : vector<1x32xf32> to vector<128x32xf32>
    %12 = arith.addf %10, %11 : vector<128x32xf32>
    %cst_12 = arith.constant 0.000000e+00 : f32
    %13 = vector.broadcast %cst_12 : f32 to vector<128x32xf32>
    %14 = arith.maximumf %12, %13 : vector<128x32xf32>
    %cst_13 = arith.constant dense<0.000000e+00> : vector<128x32xf32>
    %15 = tpu.matmul %14, %1, %cst_13 {dimension_numbers = #tpu.dot_dimension_numbers<[1], [0], [0], [1], [0, 0, 1, 1], [], []>} : vector<128x32xf32>, vector<32x32xf32>, vector<128x32xf32> -> vector<128x32xf32>
    %16 = vector.broadcast %4 : vector<1x32xf32> to vector<128x32xf32>
    %17 = arith.addf %15, %16 : vector<128x32xf32>
    %cst_14 = arith.constant 0.000000e+00 : f32
    %18 = vector.broadcast %cst_14 : f32 to vector<128x32xf32>
    %19 = arith.maximumf %17, %18 : vector<128x32xf32>
    %cst_15 = arith.constant dense<0.000000e+00> : vector<128x4xf32>
    %20 = tpu.matmul %19, %2, %cst_15 {dimension_numbers = #tpu.dot_dimension_numbers<[1], [0], [0], [1], [0, 0, 1, 1], [], []>} : vector<128x32xf32>, vector<32x4xf32>, vector<128x4xf32> -> vector<128x4xf32>
    %21 = vector.broadcast %5 : vector<1x4xf32> to vector<128x4xf32>
    %22 = arith.addf %20, %21 : vector<128x4xf32>
    %23 = arith.index_cast %7 : i32 to index
    %c0_16 = arith.constant 0 : index
    %24 = vector.load %arg8[%23, %c0_16] : memref<128x4xf32, #tpu.memory_space<vmem>>, vector<128x4xf32>
    tpu.vector_store %arg8[%23, %c0_16], %22 {strides = array<i32>} : memref<128x4xf32, #tpu.memory_space<vmem>>, vector<128x4xf32>,
    %c1_i32 = arith.constant 1 : i32
    return
  }
  func.func @transform_0(%arg0: i32) -> (i32, i32) {
    %c0_i32 = arith.constant 0 : i32
    %c0_i32_0 = arith.constant 0 : i32
    return %arg0, %c0_i32 : i32, i32
  }
  func.func @transform_1(%arg0: i32) -> (i32, i32) {
    %c0_i32 = arith.constant 0 : i32
    %c0_i32_0 = arith.constant 0 : i32
    %c0_i32_1 = arith.constant 0 : i32
    return %c0_i32, %c0_i32_0 : i32, i32
  }
  func.func @transform_2(%arg0: i32) -> (i32, i32) {
    %c0_i32 = arith.constant 0 : i32
    %c0_i32_0 = arith.constant 0 : i32
    %c0_i32_1 = arith.constant 0 : i32
    return %c0_i32, %c0_i32_0 : i32, i32
  }
  func.func @transform_3(%arg0: i32) -> (i32, i32) {
    %c0_i32 = arith.constant 0 : i32
    %c0_i32_0 = arith.constant 0 : i32
    %c0_i32_1 = arith.constant 0 : i32
    return %c0_i32, %c0_i32_0 : i32, i32
  }
  func.func @transform_4(%arg0: i32) -> (i32, i32) {
    %c0_i32 = arith.constant 0 : i32
    %c0_i32_0 = arith.constant 0 : i32
    %c0_i32_1 = arith.constant 0 : i32
    return %c0_i32, %c0_i32_0 : i32, i32
  }
  func.func @transform_5(%arg0: i32) -> (i32, i32) {
    %c0_i32 = arith.constant 0 : i32
    %c0_i32_0 = arith.constant 0 : i32
    %c0_i32_1 = arith.constant 0 : i32
    return %c0_i32, %c0_i32_0 : i32, i32
  }
  func.func @transform_6(%arg0: i32) -> (i32, i32) {
    %c0_i32 = arith.constant 0 : i32
    %c0_i32_0 = arith.constant 0 : i32
    %c0_i32_1 = arith.constant 0 : i32
    return %c0_i32, %c0_i32_0 : i32, i32
  }
  func.func @transform_7(%arg0: i32) -> (i32, i32) {
    %c0_i32 = arith.constant 0 : i32
    %c0_i32_0 = arith.constant 0 : i32
    return %arg0, %c0_i32 : i32, i32
  }
}

</mosaic_0001>

<llo_original>
// kernel: tpu_custom_call.1
$region0: #{tpu_custom_call.1}
  #allocation0 [shape = 'u32[]', space=smem, size = 0x4, offset = 0x4, fixed_abs, tag = 'smem constant byte address 0x4 - core index']
  #allocation1 [shape = 'u32[144,128]{1,0:T(1,128)}', space=vmem, size = 0x12000, scoped, tag = 'internal scratch']
  %s0 = inlined_call_operand.vmem [shape: f32[128,8], index: 0, kind: input, shape index: {}]
  %s1 = inlined_call_operand.vmem [shape: f32[8,32], index: 1, kind: input, shape index: {}]
  %s2 = inlined_call_operand.vmem [shape: f32[1,32], index: 2, kind: input, shape index: {}]
  %s3 = inlined_call_operand.vmem [shape: f32[32,32], index: 3, kind: input, shape index: {}]
  %s4 = inlined_call_operand.vmem [shape: f32[1,32], index: 4, kind: input, shape index: {}]
  %s5 = inlined_call_operand.vmem [shape: f32[32,4], index: 5, kind: input, shape index: {}]
  %s6 = inlined_call_operand.vmem [shape: f32[1,4], index: 6, kind: input, shape index: {}]
  %s7 = inlined_call_operand.vmem [shape: f32[128,4], index: 7, kind: output, shape index: {}]
  %s8 = sld [smem:[#allocation0]]
  $region38: #{tpu_custom_call.1} parent=0
    _
  %s10 = ssub.s32 1, %s8
  %s11 = scalar_select 0, %s10, %s8
  // Predicated region
  $region2: #{tpu_custom_call.1} parent=0 // pred_check
    _
  $region3: #{tpu_custom_call.1} parent=0 // pred_check_branch
    %13 = sbr.rel (0) target = $region5
  $region4: #{tpu_custom_call.1} parent=0 // pred_region
    _
  $region5: #{tpu_custom_call.1} parent=0 // pred_fallthru
    _
  // Predicated region
  $region6: #{tpu_custom_call.1} parent=0 // pred_check
    _
  $region7: #{tpu_custom_call.1} parent=0 // pred_check_branch
    %15 = sbr.rel (0) target = $region9
  $region8: #{tpu_custom_call.1} parent=0 // pred_region
    _
  $region9: #{tpu_custom_call.1} parent=0 // pred_fallthru
    _
  // Predicated region
  $region10: #{tpu_custom_call.1} parent=0 // pred_check
    _
  $region11: #{tpu_custom_call.1} parent=0 // pred_check_branch
    %17 = sbr.rel (0) target = $region13
  $region12: #{tpu_custom_call.1} parent=0 // pred_region
    _
  $region13: #{tpu_custom_call.1} parent=0 // pred_fallthru
    _
  // Predicated region
  $region14: #{tpu_custom_call.1} parent=0 // pred_check
    _
  $region15: #{tpu_custom_call.1} parent=0 // pred_check_branch
    %19 = sbr.rel (0) target = $region17
  $region16: #{tpu_custom_call.1} parent=0 // pred_region
    _
  $region17: #{tpu_custom_call.1} parent=0 // pred_fallthru
    _
  // Predicated region
  $region18: #{tpu_custom_call.1} parent=0 // pred_check
    _
  $region19: #{tpu_custom_call.1} parent=0 // pred_check_branch
    %21 = sbr.rel (0) target = $region21
  $region20: #{tpu_custom_call.1} parent=0 // pred_region
    _
  $region21: #{tpu_custom_call.1} parent=0 // pred_fallthru
    _
  // Predicated region
  $region22: #{tpu_custom_call.1} parent=0 // pred_check
    _
  $region23: #{tpu_custom_call.1} parent=0 // pred_check_branch
    %23 = sbr.rel (0) target = $region25
  $region24: #{tpu_custom_call.1} parent=0 // pred_region
    _
  $region25: #{tpu_custom_call.1} parent=0 // pred_fallthru
    _
  // Predicated region
  $region26: #{tpu_custom_call.1} parent=0 // pred_check
    _
  $region27: #{tpu_custom_call.1} parent=0 // pred_check_branch
    %25 = sbr.rel (0) target = $region29
  $region28: #{tpu_custom_call.1} parent=0 // pred_region
    _
  $region29: #{tpu_custom_call.1} parent=0 // pred_fallthru
    _
  %v26 = vld [vmem:[%s1] sm:$0xff]
  %v27 = vld [vmem:[%s3] sm:$0xff]
  %v28 = vld [vmem:[%s3 + $0x8] sm:$0xff]
  %v29 = vld [vmem:[%s3 + $0x10] sm:$0xff]
  %v30 = vld [vmem:[%s3 + $0x18] sm:$0xff]
  %v31 = vld [vmem:[%s5] sm:$0xff]
  %v32 = vld [vmem:[%s5 + $0x8] sm:$0xff]
  %v33 = vld [vmem:[%s5 + $0x10] sm:$0xff]
  %v34 = vld [vmem:[%s5 + $0x18] sm:$0xff]
  %v35 = vld [vmem:[%s2] sm:$0x1]
  %v36 = vld [vmem:[%s4] sm:$0x1]
  %v37 = vld [vmem:[%s6] sm:$0x1]
  %v38 = vld [vmem:[%s0] sm:$0xff]
  %v39 = vld [vmem:[%s0 + $0x8] sm:$0xff]
  %v40 = vld [vmem:[%s0 + $0x10] sm:$0xff]
  %v41 = vld [vmem:[%s0 + $0x18] sm:$0xff]
  %v42 = vld [vmem:[%s0 + $0x20] sm:$0xff]
  %v43 = vld [vmem:[%s0 + $0x28] sm:$0xff]
  %v44 = vld [vmem:[%s0 + $0x30] sm:$0xff]
  %v45 = vld [vmem:[%s0 + $0x38] sm:$0xff]
  %v46 = vld [vmem:[%s0 + $0x40] sm:$0xff]
  %v47 = vld [vmem:[%s0 + $0x48] sm:$0xff]
  %v48 = vld [vmem:[%s0 + $0x50] sm:$0xff]
  %v49 = vld [vmem:[%s0 + $0x58] sm:$0xff]
  %v50 = vld [vmem:[%s0 + $0x60] sm:$0xff]
  %v51 = vld [vmem:[%s0 + $0x68] sm:$0xff]
  %v52 = vld [vmem:[%s0 + $0x70] sm:$0xff]
  %v53 = vld [vmem:[%s0 + $0x78] sm:$0xff]
  %v55 = vlaneseq
  %v56 = vshrl.u32 %v55, 7
  %v57 = vsub.s32 0, %v56
  %v58 = vrot.slane %v35, %v57
  %vm60 = vcmask 64512
  %v62 = vsel %vm60, %v38, 0
  %v65 = vsel %vm60, %v39, 0
  %v68 = vsel %vm60, %v40, 0
  %v71 = vsel %vm60, %v41, 0
  %v74 = vsel %vm60, %v42, 0
  %v77 = vsel %vm60, %v43, 0
  %v80 = vsel %vm60, %v44, 0
  %v83 = vsel %vm60, %v45, 0
  %v86 = vsel %vm60, %v46, 0
  %v89 = vsel %vm60, %v47, 0
  %v92 = vsel %vm60, %v48, 0
  %v95 = vsel %vm60, %v49, 0
  %v98 = vsel %vm60, %v50, 0
  %v101 = vsel %vm60, %v51, 0
  %v104 = vsel %vm60, %v52, 0
  %v107 = vsel %vm60, %v53, 0
  %109 = vmatprep.subr.mxu0 0.0
  %110 = vmatpush1.msra.mxu0 0.0
  %111 = vmatprep.subr.mxu0 0.0
  %112 = vmatpush1.msra.mxu0 0.0
  %113 = vmatprep.subr.mxu0 0.0
  %114 = vmatpush1.msra.mxu0 0.0
  %115 = vmatprep.subr.mxu0 0.0
  %116 = vmatpush1.msra.mxu0 0.0
  %117 = vmatprep.subr.mxu0 0.0
  %118 = vmatpush1.msra.mxu0 0.0
  %119 = vmatprep.subr.mxu0 0.0
  %120 = vmatpush1.msra.mxu0 0.0
  %121 = vmatprep.subr.mxu0 0.0
  %122 = vmatpush1.msra.mxu0 0.0
  %123 = vmatprep.subr.mxu0 0.0
  %124 = vmatpush1.msra.mxu0 0.0
  %125 = vmatprep.subr.mxu0 0.0
  %126 = vmatpush1.msra.mxu0 0.0
  %127 = vmatprep.subr.mxu0 0.0
  %128 = vmatpush1.msra.mxu0 0.0
  %129 = vmatprep.subr.mxu0 0.0
  %130 = vmatpush1.msra.mxu0 0.0
  %131 = vmatprep.subr.mxu0 0.0
  %132 = vmatpush1.msra.mxu0 0.0
  %133 = vmatprep.subr.mxu0 0.0
  %134 = vmatpush1.msra.mxu0 0.0
  %135 = vmatprep.subr.mxu0 0.0
  %136 = vmatpush1.msra.mxu0 0.0
  %137 = vmatprep.subr.mxu0 0.0
  %138 = vmatpush1.msra.mxu0 0.0
  %139 = vmatprep.subr.mxu0 0.0
  %140 = vmatpush1.msra.mxu0 %v26
  %141 = vmatprep.subr.mxu0 0.0
  %142 = vmatpush2.msra.mxu0 0.0
  %143 = vmatprep.subr.mxu0 0.0
  %144 = vmatpush2.msra.mxu0 0.0
  %145 = vmatprep.subr.mxu0 0.0
  %146 = vmatpush2.msra.mxu0 0.0
  %147 = vmatprep.subr.mxu0 0.0
  %148 = vmatpush2.msra.mxu0 0.0
  %149 = vmatprep.subr.mxu0 0.0
  %150 = vmatpush2.msra.mxu0 0.0
  %151 = vmatprep.subr.mxu0 0.0
  %152 = vmatpush2.msra.mxu0 0.0
  %153 = vmatprep.subr.mxu0 0.0
  %154 = vmatpush2.msra.mxu0 0.0
  %155 = vmatprep.subr.mxu0 0.0
  %156 = vmatpush2.msra.mxu0 0.0
  %157 = vmatprep.subr.mxu0 0.0
  %158 = vmatpush2.msra.mxu0 0.0
  %159 = vmatprep.subr.mxu0 0.0
  %160 = vmatpush2.msra.mxu0 0.0
  %161 = vmatprep.subr.mxu0 0.0
  %162 = vmatpush2.msra.mxu0 0.0
  %163 = vmatprep.subr.mxu0 0.0
  %164 = vmatpush2.msra.mxu0 0.0
  %165 = vmatprep.subr.mxu0 0.0
  %166 = vmatpush2.msra.mxu0 0.0
  %167 = vmatprep.subr.mxu0 0.0
  %168 = vmatpush2.msra.mxu0 0.0
  %169 = vmatprep.subr.mxu0 0.0
  %170 = vmatpush2.msra.mxu0 0.0
  %171 = vmatprep.subr.mxu0 0.0
  %172 = vmatpush2.msra.mxu0 0.0
  %173 = vmatprep.mubr.f32.mxu0 0.0
  %174 = vmatmul.mubr.f32.gmra.mxu0 %v62
  %v175 = vpop.f32.mrf.mxu0
  %v176 = vadd.f32 %v58, %v175
  %v177 = vpop.f32.mrf.mxu0
  %178 = vmatprep.mubr.f32.mxu0 0.0
  %179 = vmatmul.mubr.f32.gmra.mxu0 %v65
  %v180 = vpop.f32.mrf.mxu0
  %v181 = vadd.f32 %v58, %v180
  %v182 = vpop.f32.mrf.mxu0
  %183 = vmatprep.mubr.f32.mxu0 0.0
  %184 = vmatmul.mubr.f32.gmra.mxu0 %v68
  %v185 = vpop.f32.mrf.mxu0
  %v186 = vadd.f32 %v58, %v185
  %v187 = vpop.f32.mrf.mxu0
  %188 = vmatprep.mubr.f32.mxu0 0.0
  %189 = vmatmul.mubr.f32.gmra.mxu0 %v71
  %v190 = vpop.f32.mrf.mxu0
  %v191 = vadd.f32 %v58, %v190
  %v192 = vpop.f32.mrf.mxu0
  %193 = vmatprep.mubr.f32.mxu0 0.0
  %194 = vmatmul.mubr.f32.gmra.mxu0 %v74
  %v195 = vpop.f32.mrf.mxu0
  %v196 = vadd.f32 %v58, %v195
  %v197 = vpop.f32.mrf.mxu0
  %198 = vmatprep.mubr.f32.mxu0 0.0
  %199 = vmatmul.mubr.f32.gmra.mxu0 %v77
  %v200 = vpop.f32.mrf.mxu0
  %v201 = vadd.f32 %v58, %v200
  %v202 = vpop.f32.mrf.mxu0
  %203 = vmatprep.mubr.f32.mxu0 0.0
  %204 = vmatmul.mubr.f32.gmra.mxu0 %v80
  %v205 = vpop.f32.mrf.mxu0
  %v206 = vadd.f32 %v58, %v205
  %v207 = vpop.f32.mrf.mxu0
  %208 = vmatprep.mubr.f32.mxu0 0.0
  %209 = vmatmul.mubr.f32.gmra.mxu0 %v83
  %v210 = vpop.f32.mrf.mxu0
  %v211 = vadd.f32 %v58, %v210
  %v212 = vpop.f32.mrf.mxu0
  %213 = vmatprep.mubr.f32.mxu0 0.0
  %214 = vmatmul.mubr.f32.gmra.mxu0 %v86
  %v215 = vpop.f32.mrf.mxu0
  %v216 = vadd.f32 %v58, %v215
  %v217 = vpop.f32.mrf.mxu0
  %218 = vmatprep.mubr.f32.mxu0 0.0
  %219 = vmatmul.mubr.f32.gmra.mxu0 %v89
  %v220 = vpop.f32.mrf.mxu0
  %v221 = vadd.f32 %v58, %v220
  %v222 = vpop.f32.mrf.mxu0
  %223 = vmatprep.mubr.f32.mxu0 0.0
  %224 = vmatmul.mubr.f32.gmra.mxu0 %v92
  %v225 = vpop.f32.mrf.mxu0
  %v226 = vadd.f32 %v58, %v225
  %v227 = vpop.f32.mrf.mxu0
  %228 = vmatprep.mubr.f32.mxu0 0.0
  %229 = vmatmul.mubr.f32.gmra.mxu0 %v95
  %v230 = vpop.f32.mrf.mxu0
  %v231 = vadd.f32 %v58, %v230
  %v232 = vpop.f32.mrf.mxu0
  %233 = vmatprep.mubr.f32.mxu0 0.0
  %234 = vmatmul.mubr.f32.gmra.mxu0 %v98
  %v235 = vpop.f32.mrf.mxu0
  %v236 = vadd.f32 %v58, %v235
  %v237 = vpop.f32.mrf.mxu0
  %238 = vmatprep.mubr.f32.mxu0 0.0
  %239 = vmatmul.mubr.f32.gmra.mxu0 %v101
  %v240 = vpop.f32.mrf.mxu0
  %v241 = vadd.f32 %v58, %v240
  %v242 = vpop.f32.mrf.mxu0
  %243 = vmatprep.mubr.f32.mxu0 0.0
  %244 = vmatmul.mubr.f32.gmra.mxu0 %v104
  %v245 = vpop.f32.mrf.mxu0
  %v246 = vadd.f32 %v58, %v245
  %v247 = vpop.f32.mrf.mxu0
  %248 = vmatprep.mubr.f32.mxu0 0.0
  %249 = vmatmul.mubr.f32.gmra.mxu0 %v107
  %v250 = vpop.f32.mrf.mxu0
  %v251 = vadd.f32 %v58, %v250
  %v252 = vpop.f32.mrf.mxu0
  %253 = vdwg.mxu0
  %v254 = vmax.f32 %v176, 0.0
  %v255 = vmax.f32 %v181, 0.0
  %v256 = vmax.f32 %v186, 0.0
  %v257 = vmax.f32 %v191, 0.0
  %v258 = vmax.f32 %v196, 0.0
  %v259 = vmax.f32 %v201, 0.0
  %v260 = vmax.f32 %v206, 0.0
  %v261 = vmax.f32 %v211, 0.0
  %v262 = vmax.f32 %v216, 0.0
  %v263 = vmax.f32 %v221, 0.0
  %v264 = vmax.f32 %v226, 0.0
  %v265 = vmax.f32 %v231, 0.0
  %v266 = vmax.f32 %v236, 0.0
  %v267 = vmax.f32 %v241, 0.0
  %v268 = vmax.f32 %v246, 0.0
  %v269 = vmax.f32 %v251, 0.0
  %v271 = vlaneseq
  %v272 = vshrl.u32 %v271, 7
  %v273 = vsub.s32 0, %v272
  %v274 = vrot.slane %v36, %v273
  %vm276 = vcmask 261120
  %v278 = vsel %vm276, %v254, 0
  %v281 = vsel %vm276, %v255, 0
  %v284 = vsel %vm276, %v256, 0
  %v287 = vsel %vm276, %v257, 0
  %v290 = vsel %vm276, %v258, 0
  %v293 = vsel %vm276, %v259, 0
  %v296 = vsel %vm276, %v260, 0
  %v299 = vsel %vm276, %v261, 0
  %v302 = vsel %vm276, %v262, 0
  %v305 = vsel %vm276, %v263, 0
  %v308 = vsel %vm276, %v264, 0
  %v311 = vsel %vm276, %v265, 0
  %v314 = vsel %vm276, %v266, 0
  %v317 = vsel %vm276, %v267, 0
  %v320 = vsel %vm276, %v268, 0
  %v323 = vsel %vm276, %v269, 0
  %325 = vmatprep.subr.mxu0 0.0
  %326 = vmatpush1.msra.mxu0 0.0
  %327 = vmatprep.subr.mxu0 0.0
  %328 = vmatpush1.msra.mxu0 0.0
  %329 = vmatprep.subr.mxu0 0.0
  %330 = vmatpush1.msra.mxu0 0.0
  %331 = vmatprep.subr.mxu0 0.0
  %332 = vmatpush1.msra.mxu0 0.0
  %333 = vmatprep.subr.mxu0 0.0
  %334 = vmatpush1.msra.mxu0 0.0
  %335 = vmatprep.subr.mxu0 0.0
  %336 = vmatpush1.msra.mxu0 0.0
  %337 = vmatprep.subr.mxu0 0.0
  %338 = vmatpush1.msra.mxu0 0.0
  %339 = vmatprep.subr.mxu0 0.0
  %340 = vmatpush1.msra.mxu0 0.0
  %341 = vmatprep.subr.mxu0 0.0
  %342 = vmatpush1.msra.mxu0 0.0
  %343 = vmatprep.subr.mxu0 0.0
  %344 = vmatpush1.msra.mxu0 0.0
  %345 = vmatprep.subr.mxu0 0.0
  %346 = vmatpush1.msra.mxu0 0.0
  %347 = vmatprep.subr.mxu0 0.0
  %348 = vmatpush1.msra.mxu0 0.0
  %349 = vmatprep.subr.mxu0 0.0
  %350 = vmatpush1.msra.mxu0 %v30
  %351 = vmatprep.subr.mxu0 0.0
  %352 = vmatpush1.msra.mxu0 %v29
  %353 = vmatprep.subr.mxu0 0.0
  %354 = vmatpush1.msra.mxu0 %v28
  %355 = vmatprep.subr.mxu0 0.0
  %356 = vmatpush1.msra.mxu0 %v27
  %357 = vmatprep.subr.mxu0 0.0
  %358 = vmatpush2.msra.mxu0 0.0
  %359 = vmatprep.subr.mxu0 0.0
  %360 = vmatpush2.msra.mxu0 0.0
  %361 = vmatprep.subr.mxu0 0.0
  %362 = vmatpush2.msra.mxu0 0.0
  %363 = vmatprep.subr.mxu0 0.0
  %364 = vmatpush2.msra.mxu0 0.0
  %365 = vmatprep.subr.mxu0 0.0
  %366 = vmatpush2.msra.mxu0 0.0
  %367 = vmatprep.subr.mxu0 0.0
  %368 = vmatpush2.msra.mxu0 0.0
  %369 = vmatprep.subr.mxu0 0.0
  %370 = vmatpush2.msra.mxu0 0.0
  %371 = vmatprep.subr.mxu0 0.0
  %372 = vmatpush2.msra.mxu0 0.0
  %373 = vmatprep.subr.mxu0 0.0
  %374 = vmatpush2.msra.mxu0 0.0
  %375 = vmatprep.subr.mxu0 0.0
  %376 = vmatpush2.msra.mxu0 0.0
  %377 = vmatprep.subr.mxu0 0.0
  %378 = vmatpush2.msra.mxu0 0.0
  %379 = vmatprep.subr.mxu0 0.0
  %380 = vmatpush2.msra.mxu0 0.0
  %381 = vmatprep.subr.mxu0 0.0
  %382 = vmatpush2.msra.mxu0 0.0
  %383 = vmatprep.subr.mxu0 0.0
  %384 = vmatpush2.msra.mxu0 0.0
  %385 = vmatprep.subr.mxu0 0.0
  %386 = vmatpush2.msra.mxu0 0.0
  %387 = vmatprep.subr.mxu0 0.0
  %388 = vmatpush2.msra.mxu0 0.0
  %389 = vmatprep.mubr.f32.mxu0 0.0
  %390 = vmatmul.mubr.f32.gmra.mxu0 %v278
  %v391 = vpop.f32.mrf.mxu0
  %v392 = vadd.f32 %v274, %v391
  %v393 = vpop.f32.mrf.mxu0
  %394 = vmatprep.mubr.f32.mxu0 0.0
  %395 = vmatmul.mubr.f32.gmra.mxu0 %v281
  %v396 = vpop.f32.mrf.mxu0
  %v397 = vadd.f32 %v274, %v396
  %v398 = vpop.f32.mrf.mxu0
  %399 = vmatprep.mubr.f32.mxu0 0.0
  %400 = vmatmul.mubr.f32.gmra.mxu0 %v284
  %v401 = vpop.f32.mrf.mxu0
  %v402 = vadd.f32 %v274, %v401
  %v403 = vpop.f32.mrf.mxu0
  %404 = vmatprep.mubr.f32.mxu0 0.0
  %405 = vmatmul.mubr.f32.gmra.mxu0 %v287
  %v406 = vpop.f32.mrf.mxu0
  %v407 = vadd.f32 %v274, %v406
  %v408 = vpop.f32.mrf.mxu0
  %409 = vmatprep.mubr.f32.mxu0 0.0
  %410 = vmatmul.mubr.f32.gmra.mxu0 %v290
  %v411 = vpop.f32.mrf.mxu0
  %v412 = vadd.f32 %v274, %v411
  %v413 = vpop.f32.mrf.mxu0
  %414 = vmatprep.mubr.f32.mxu0 0.0
  %415 = vmatmul.mubr.f32.gmra.mxu0 %v293
  %v416 = vpop.f32.mrf.mxu0
  %v417 = vadd.f32 %v274, %v416
  %v418 = vpop.f32.mrf.mxu0
  %419 = vmatprep.mubr.f32.mxu0 0.0
  %420 = vmatmul.mubr.f32.gmra.mxu0 %v296
  %v421 = vpop.f32.mrf.mxu0
  %v422 = vadd.f32 %v274, %v421
  %v423 = vpop.f32.mrf.mxu0
  %424 = vmatprep.mubr.f32.mxu0 0.0
  %425 = vmatmul.mubr.f32.gmra.mxu0 %v299
  %v426 = vpop.f32.mrf.mxu0
  %v427 = vadd.f32 %v274, %v426
  %v428 = vpop.f32.mrf.mxu0
  %429 = vmatprep.mubr.f32.mxu0 0.0
  %430 = vmatmul.mubr.f32.gmra.mxu0 %v302
  %v431 = vpop.f32.mrf.mxu0
  %v432 = vadd.f32 %v274, %v431
  %v433 = vpop.f32.mrf.mxu0
  %434 = vmatprep.mubr.f32.mxu0 0.0
  %435 = vmatmul.mubr.f32.gmra.mxu0 %v305
  %v436 = vpop.f32.mrf.mxu0
  %v437 = vadd.f32 %v274, %v436
  %v438 = vpop.f32.mrf.mxu0
  %439 = vmatprep.mubr.f32.mxu0 0.0
  %440 = vmatmul.mubr.f32.gmra.mxu0 %v308
  %v441 = vpop.f32.mrf.mxu0
  %v442 = vadd.f32 %v274, %v441
  %v443 = vpop.f32.mrf.mxu0
  %444 = vmatprep.mubr.f32.mxu0 0.0
  %445 = vmatmul.mubr.f32.gmra.mxu0 %v311
  %v446 = vpop.f32.mrf.mxu0
  %v447 = vadd.f32 %v274, %v446
  %v448 = vpop.f32.mrf.mxu0
  %449 = vmatprep.mubr.f32.mxu0 0.0
  %450 = vmatmul.mubr.f32.gmra.mxu0 %v314
  %v451 = vpop.f32.mrf.mxu0
  %v452 = vadd.f32 %v274, %v451
  %v453 = vpop.f32.mrf.mxu0
  %454 = vmatprep.mubr.f32.mxu0 0.0
  %455 = vmatmul.mubr.f32.gmra.mxu0 %v317
  %v456 = vpop.f32.mrf.mxu0
  %v457 = vadd.f32 %v274, %v456
  %v458 = vpop.f32.mrf.mxu0
  %459 = vmatprep.mubr.f32.mxu0 0.0
  %460 = vmatmul.mubr.f32.gmra.mxu0 %v320
  %v461 = vpop.f32.mrf.mxu0
  %v462 = vadd.f32 %v274, %v461
  %v463 = vpop.f32.mrf.mxu0
  %464 = vmatprep.mubr.f32.mxu0 0.0
  %465 = vmatmul.mubr.f32.gmra.mxu0 %v323
  %v466 = vpop.f32.mrf.mxu0
  %v467 = vadd.f32 %v274, %v466
  %v468 = vpop.f32.mrf.mxu0
  %469 = vdwg.mxu0
  %v470 = vmax.f32 %v392, 0.0
  %v471 = vmax.f32 %v397, 0.0
  %v472 = vmax.f32 %v402, 0.0
  %v473 = vmax.f32 %v407, 0.0
  %v474 = vmax.f32 %v412, 0.0
  %v475 = vmax.f32 %v417, 0.0
  %v476 = vmax.f32 %v422, 0.0
  %v477 = vmax.f32 %v427, 0.0
  %v478 = vmax.f32 %v432, 0.0
  %v479 = vmax.f32 %v437, 0.0
  %v480 = vmax.f32 %v442, 0.0
  %v481 = vmax.f32 %v447, 0.0
  %v482 = vmax.f32 %v452, 0.0
  %v483 = vmax.f32 %v457, 0.0
  %v484 = vmax.f32 %v462, 0.0
  %v485 = vmax.f32 %v467, 0.0
  %v487 = vlaneseq
  %v488 = vshrl.u32 %v487, 7
  %v489 = vsub.s32 0, %v488
  %v490 = vrot.slane %v37, %v489
  %v493 = vsel %vm276, %v470, 0
  %v496 = vsel %vm276, %v471, 0
  %v499 = vsel %vm276, %v472, 0
  %v502 = vsel %vm276, %v473, 0
  %v505 = vsel %vm276, %v474, 0
  %v508 = vsel %vm276, %v475, 0
  %v511 = vsel %vm276, %v476, 0
  %v514 = vsel %vm276, %v477, 0
  %v517 = vsel %vm276, %v478, 0
  %v520 = vsel %vm276, %v479, 0
  %v523 = vsel %vm276, %v480, 0
  %v526 = vsel %vm276, %v481, 0
  %v529 = vsel %vm276, %v482, 0
  %v532 = vsel %vm276, %v483, 0
  %v535 = vsel %vm276, %v484, 0
  %v538 = vsel %vm276, %v485, 0
  %540 = vmatprep.subr.mxu0 0.0
  %541 = vmatpush1.msra.mxu0 0.0
  %542 = vmatprep.subr.mxu0 0.0
  %543 = vmatpush1.msra.mxu0 0.0
  %544 = vmatprep.subr.mxu0 0.0
  %545 = vmatpush1.msra.mxu0 0.0
  %546 = vmatprep.subr.mxu0 0.0
  %547 = vmatpush1.msra.mxu0 0.0
  %548 = vmatprep.subr.mxu0 0.0
  %549 = vmatpush1.msra.mxu0 0.0
  %550 = vmatprep.subr.mxu0 0.0
  %551 = vmatpush1.msra.mxu0 0.0
  %552 = vmatprep.subr.mxu0 0.0
  %553 = vmatpush1.msra.mxu0 0.0
  %554 = vmatprep.subr.mxu0 0.0
  %555 = vmatpush1.msra.mxu0 0.0
  %556 = vmatprep.subr.mxu0 0.0
  %557 = vmatpush1.msra.mxu0 0.0
  %558 = vmatprep.subr.mxu0 0.0
  %559 = vmatpush1.msra.mxu0 0.0
  %560 = vmatprep.subr.mxu0 0.0
  %561 = vmatpush1.msra.mxu0 0.0
  %562 = vmatprep.subr.mxu0 0.0
  %563 = vmatpush1.msra.mxu0 0.0
  %564 = vmatprep.subr.mxu0 0.0
  %565 = vmatpush1.msra.mxu0 %v34
  %566 = vmatprep.subr.mxu0 0.0
  %567 = vmatpush1.msra.mxu0 %v33
  %568 = vmatprep.subr.mxu0 0.0
  %569 = vmatpush1.msra.mxu0 %v32
  %570 = vmatprep.subr.mxu0 0.0
  %571 = vmatpush1.msra.mxu0 %v31
  %572 = vmatprep.subr.mxu0 0.0
  %573 = vmatpush2.msra.mxu0 0.0
  %574 = vmatprep.subr.mxu0 0.0
  %575 = vmatpush2.msra.mxu0 0.0
  %576 = vmatprep.subr.mxu0 0.0
  %577 = vmatpush2.msra.mxu0 0.0
  %578 = vmatprep.subr.mxu0 0.0
  %579 = vmatpush2.msra.mxu0 0.0
  %580 = vmatprep.subr.mxu0 0.0
  %581 = vmatpush2.msra.mxu0 0.0
  %582 = vmatprep.subr.mxu0 0.0
  %583 = vmatpush2.msra.mxu0 0.0
  %584 = vmatprep.subr.mxu0 0.0
  %585 = vmatpush2.msra.mxu0 0.0
  %586 = vmatprep.subr.mxu0 0.0
  %587 = vmatpush2.msra.mxu0 0.0
  %588 = vmatprep.subr.mxu0 0.0
  %589 = vmatpush2.msra.mxu0 0.0
  %590 = vmatprep.subr.mxu0 0.0
  %591 = vmatpush2.msra.mxu0 0.0
  %592 = vmatprep.subr.mxu0 0.0
  %593 = vmatpush2.msra.mxu0 0.0
  %594 = vmatprep.subr.mxu0 0.0
  %595 = vmatpush2.msra.mxu0 0.0
  %596 = vmatprep.subr.mxu0 0.0
  %597 = vmatpush2.msra.mxu0 0.0
  %598 = vmatprep.subr.mxu0 0.0
  %599 = vmatpush2.msra.mxu0 0.0
  %600 = vmatprep.subr.mxu0 0.0
  %601 = vmatpush2.msra.mxu0 0.0
  %602 = vmatprep.subr.mxu0 0.0
  %603 = vmatpush2.msra.mxu0 0.0
  %604 = vmatprep.mubr.f32.mxu0 0.0
  %605 = vmatmul.mubr.f32.gmra.mxu0 %v493
  %v606 = vpop.f32.mrf.mxu0
  %v607 = vadd.f32 %v490, %v606
  %v608 = vpop.f32.mrf.mxu0
  %609 = vmatprep.mubr.f32.mxu0 0.0
  %610 = vmatmul.mubr.f32.gmra.mxu0 %v496
  %v611 = vpop.f32.mrf.mxu0
  %v612 = vadd.f32 %v490, %v611
  %v613 = vpop.f32.mrf.mxu0
  %614 = vmatprep.mubr.f32.mxu0 0.0
  %615 = vmatmul.mubr.f32.gmra.mxu0 %v499
  %v616 = vpop.f32.mrf.mxu0
  %v617 = vadd.f32 %v490, %v616
  %v618 = vpop.f32.mrf.mxu0
  %619 = vmatprep.mubr.f32.mxu0 0.0
  %620 = vmatmul.mubr.f32.gmra.mxu0 %v502
  %v621 = vpop.f32.mrf.mxu0
  %v622 = vadd.f32 %v490, %v621
  %v623 = vpop.f32.mrf.mxu0
  %624 = vmatprep.mubr.f32.mxu0 0.0
  %625 = vmatmul.mubr.f32.gmra.mxu0 %v505
  %v626 = vpop.f32.mrf.mxu0
  %v627 = vadd.f32 %v490, %v626
  %v628 = vpop.f32.mrf.mxu0
  %629 = vmatprep.mubr.f32.mxu0 0.0
  %630 = vmatmul.mubr.f32.gmra.mxu0 %v508
  %v631 = vpop.f32.mrf.mxu0
  %v632 = vadd.f32 %v490, %v631
  %v633 = vpop.f32.mrf.mxu0
  %634 = vmatprep.mubr.f32.mxu0 0.0
  %635 = vmatmul.mubr.f32.gmra.mxu0 %v511
  %v636 = vpop.f32.mrf.mxu0
  %v637 = vadd.f32 %v490, %v636
  %v638 = vpop.f32.mrf.mxu0
  %639 = vmatprep.mubr.f32.mxu0 0.0
  %640 = vmatmul.mubr.f32.gmra.mxu0 %v514
  %v641 = vpop.f32.mrf.mxu0
  %v642 = vadd.f32 %v490, %v641
  %v643 = vpop.f32.mrf.mxu0
  %644 = vmatprep.mubr.f32.mxu0 0.0
  %645 = vmatmul.mubr.f32.gmra.mxu0 %v517
  %v646 = vpop.f32.mrf.mxu0
  %v647 = vadd.f32 %v490, %v646
  %v648 = vpop.f32.mrf.mxu0
  %649 = vmatprep.mubr.f32.mxu0 0.0
  %650 = vmatmul.mubr.f32.gmra.mxu0 %v520
  %v651 = vpop.f32.mrf.mxu0
  %v652 = vadd.f32 %v490, %v651
  %v653 = vpop.f32.mrf.mxu0
  %654 = vmatprep.mubr.f32.mxu0 0.0
  %655 = vmatmul.mubr.f32.gmra.mxu0 %v523
  %v656 = vpop.f32.mrf.mxu0
  %v657 = vadd.f32 %v490, %v656
  %v658 = vpop.f32.mrf.mxu0
  %659 = vmatprep.mubr.f32.mxu0 0.0
  %660 = vmatmul.mubr.f32.gmra.mxu0 %v526
  %v661 = vpop.f32.mrf.mxu0
  %v662 = vadd.f32 %v490, %v661
  %v663 = vpop.f32.mrf.mxu0
  %664 = vmatprep.mubr.f32.mxu0 0.0
  %665 = vmatmul.mubr.f32.gmra.mxu0 %v529
  %v666 = vpop.f32.mrf.mxu0
  %v667 = vadd.f32 %v490, %v666
  %v668 = vpop.f32.mrf.mxu0
  %669 = vmatprep.mubr.f32.mxu0 0.0
  %670 = vmatmul.mubr.f32.gmra.mxu0 %v532
  %v671 = vpop.f32.mrf.mxu0
  %v672 = vadd.f32 %v490, %v671
  %v673 = vpop.f32.mrf.mxu0
  %674 = vmatprep.mubr.f32.mxu0 0.0
  %675 = vmatmul.mubr.f32.gmra.mxu0 %v535
  %v676 = vpop.f32.mrf.mxu0
  %v677 = vadd.f32 %v490, %v676
  %v678 = vpop.f32.mrf.mxu0
  %679 = vmatprep.mubr.f32.mxu0 0.0
  %680 = vmatmul.mubr.f32.gmra.mxu0 %v538
  %v681 = vpop.f32.mrf.mxu0
  %v682 = vadd.f32 %v490, %v681
  %v683 = vpop.f32.mrf.mxu0
  %684 = vdwg.mxu0
  %vm685 = vcmask 31744
  %686 = vst.msk [vmem:[%s7] sm:$0xff] %vm685, %v607
  %687 = vst.msk [vmem:[%s7 + $0x8] sm:$0xff] %vm685, %v612
  %688 = vst.msk [vmem:[%s7 + $0x10] sm:$0xff] %vm685, %v617
  %689 = vst.msk [vmem:[%s7 + $0x18] sm:$0xff] %vm685, %v622
  %690 = vst.msk [vmem:[%s7 + $0x20] sm:$0xff] %vm685, %v627
  %691 = vst.msk [vmem:[%s7 + $0x28] sm:$0xff] %vm685, %v632
  %692 = vst.msk [vmem:[%s7 + $0x30] sm:$0xff] %vm685, %v637
  %693 = vst.msk [vmem:[%s7 + $0x38] sm:$0xff] %vm685, %v642
  %694 = vst.msk [vmem:[%s7 + $0x40] sm:$0xff] %vm685, %v647
  %695 = vst.msk [vmem:[%s7 + $0x48] sm:$0xff] %vm685, %v652
  %696 = vst.msk [vmem:[%s7 + $0x50] sm:$0xff] %vm685, %v657
  %697 = vst.msk [vmem:[%s7 + $0x58] sm:$0xff] %vm685, %v662
  %698 = vst.msk [vmem:[%s7 + $0x60] sm:$0xff] %vm685, %v667
  %699 = vst.msk [vmem:[%s7 + $0x68] sm:$0xff] %vm685, %v672
  %700 = vst.msk [vmem:[%s7 + $0x70] sm:$0xff] %vm685, %v677
  %701 = vst.msk [vmem:[%s7 + $0x78] sm:$0xff] %vm685, %v682
  // Predicated region
  $region30: #{tpu_custom_call.1} parent=0 // pred_check
    _
  $region31: #{tpu_custom_call.1} parent=0 // pred_check_branch
    %703 = sbr.rel (0) target = $region33
  $region32: #{tpu_custom_call.1} parent=0 // pred_region
    _
  $region33: #{tpu_custom_call.1} parent=0 // pred_fallthru
    _
  // Predicated region
  $region34: #{tpu_custom_call.1} parent=0 // pred_check
    _
  $region35: #{tpu_custom_call.1} parent=0 // pred_check_branch
    %705 = sbr.rel (0) target = $region37
  $region36: #{tpu_custom_call.1} parent=0 // pred_region
    _
  $region37: #{tpu_custom_call.1} parent=0 // pred_fallthru
    _

</llo_original>
